<compile_context>
chip_gen: v6e
topology: v6e:2x2x1
jax: 0.10.0
libtpu: 0.0.40
codegen_flags: <defaults>
</compile_context>

<pallas_src>
from functools import partial

import jax
import jax.numpy as jnp
from jax.experimental import pallas as pl
from jax.experimental.pallas import tpu as pltpu


def _mlp_kernel(x_ref, w1_ref, b1_ref, w2_ref, b2_ref, w3_ref, b3_ref, o_ref,
                *, vpu_head):
    # Batch-along-lanes: x and every intermediate are (features, tb).
    x = x_ref[...]                                                    # (in, tb)

    h1 = jnp.dot(w1_ref[...], x, preferred_element_type=jnp.float32)  # (h1, tb)
    h1 = jnp.maximum(h1 + b1_ref[...], 0.0)                           # f32 bias + ReLU

    h2 = jnp.dot(w2_ref[...], h1.astype(w2_ref.dtype),
                 preferred_element_type=jnp.float32)                  # (h2, tb)
    h2 = jnp.maximum(h2 + b2_ref[...], 0.0)

    if vpu_head:
        # output_size == 1: an N=1 matmul wastes the MXU (1/128..1/256 columns)
        # and pays a full push/pop per tile. VPU multiply + sublane (XLU) reduce.
        out = jnp.sum(h2 * w3_ref[...].astype(jnp.float32),
                      axis=0, keepdims=True)                          # (1, tb)
    else:
        out = jnp.dot(w3_ref[...], h2.astype(w3_ref.dtype),
                      preferred_element_type=jnp.float32)             # (out, tb)

    o_ref[...] = (out + b3_ref[...]).astype(o_ref.dtype)


def _round_up(n, m):
    return (n + m - 1) // m * m


def _cdiv(a, b):
    return -(-a // b)


def _chip_profile():
    """Per-generation knobs: #TensorCores and a VMEM budget for this kernel."""
    try:
        kind = jax.devices()[0].device_kind.lower()
    except Exception:
        kind = ""
    if "v7" in kind:
        # 64 MiB physical VMEM per TensorCore, 2 TensorCores per chip.
        return {"n_tc": 2, "vmem_cap": 48 << 20}
    # v5e / v6e: single TensorCore, 128 MiB physical VMEM. Unknown chips fall
    # here too; the kernel only requests ~what it actually needs (see below).
    return {"n_tc": 1, "vmem_cap": 96 << 20}


def vf_baseline_forward(x, params, *, batch_tile=8192, compute_dtype=jnp.bfloat16):
    """Pallas forward pass of VFBaseLine.

    x: (B, input_size)
    params: dict with w1 (in, h1), b1 (1, h1), w2 (h1, h2), b2 (1, h2),
            w3 (h2, out), b3 (1, out)
    compute_dtype: dtype for matmul operands (default bf16 on all generations);
            accumulation, bias-add and ReLU always stay f32.
    """
    out_dtype = x.dtype
    B, in_size = x.shape

    w1, b1 = params["w1"], params["b1"]
    w2, b2 = params["w2"], params["b2"]
    w3, b3 = params["w3"], params["b3"]
    h1, h2 = w1.shape[1], w2.shape[1]
    out_size = w3.shape[1]
    vpu_head = out_size == 1

    cdt = jnp.dtype(compute_dtype) if compute_dtype is not None else jnp.dtype(x.dtype)
    out_itemsize = jnp.dtype(out_dtype).itemsize

    # PyTorch orientation (out_features leading) so batch stays on lanes;
    # biases as columns. Tiny one-off XLA transposes in the wrapper.
    w1_t = w1.T.astype(cdt)                                # (h1, in)
    w2_t = w2.T.astype(cdt)                                # (h2, h1)
    b1_t = b1.T.astype(jnp.float32)                        # (h1, 1)
    b2_t = b2.T.astype(jnp.float32)                        # (h2, 1)
    b3_t = b3.T.astype(jnp.float32)                        # (out, 1)
    # VPU head keeps w3 in f32 (it is used in f32 VPU math); matmul head in cdt.
    w3_k = w3.astype(jnp.float32) if vpu_head else w3.T.astype(cdt)

    weight_bytes = sum(int(a.size) * a.dtype.itemsize
                       for a in (w1_t, b1_t, w2_t, b2_t, w3_k, b3_t))

    prof = _chip_profile()

    # Per-row VMEM: double-buffered x tile + out tile, plus f32 intermediates.
    per_row = (2 * (in_size * cdt.itemsize + out_size * out_itemsize)
               + (h1 + h2 + out_size) * 4)
    fixed = 2 * weight_bytes + (2 << 20)                   # weights (2-buffered) + slack
    budget = int(prof["vmem_cap"] * 0.75)
    tb_cap = max(128, ((budget - fixed) // per_row) // 128 * 128)

    # Step count first, then tile (caps padding at < 128 rows per step).
    # Keep >= 2 grid steps only where a second TensorCore exists (v7x).
    min_steps = prof["n_tc"] if B > 128 else 1
    tb_target = max(128, min(_round_up(batch_tile, 128), tb_cap))
    n_steps = max(_cdiv(B, tb_target), min_steps)
    tb = min(_round_up(_cdiv(B, n_steps), 128), tb_cap)
    n_steps = max(_cdiv(B, tb), min_steps)
    b_pad = n_steps * tb

    # Lane-dense x: (in_size, B) so batch maps to lanes end-to-end.
    x_t = x.astype(cdt).T                                  # (in, B)
    if b_pad != B:
        x_t = jnp.pad(x_t, ((0, 0), (0, b_pad - B)))

    vmem_need = per_row * tb + 2 * weight_bytes
    vmem_limit = int(min(prof["vmem_cap"], max(2 * vmem_need, 32 << 20)))

    flops = 2 * b_pad * (in_size * h1 + h1 * h2 + h2 * out_size)
    bytes_accessed = (int(x_t.size) * x_t.dtype.itemsize
                      + weight_bytes
                      + out_size * b_pad * out_itemsize)

    full = lambda shape: pl.BlockSpec(shape, lambda i: (0, 0))

    out_t = pl.pallas_call(
        partial(_mlp_kernel, vpu_head=vpu_head),
        out_shape=jax.ShapeDtypeStruct((out_size, b_pad), out_dtype),
        grid_spec=pltpu.PrefetchScalarGridSpec(
            num_scalar_prefetch=0,
            grid=(n_steps,),
            in_specs=[
                pl.BlockSpec((in_size, tb), lambda i: (0, i)),   # x (lane-dense batch)
                full((h1, in_size)),                             # W1
                full((h1, 1)),                                   # b1
                full((h2, h1)),                                  # W2
                full((h2, 1)),                                   # b2
                full(w3_k.shape),                                # W3 / head vector
                full((out_size, 1)),                             # b3
            ],
            out_specs=pl.BlockSpec((out_size, tb), lambda i: (0, i)),
        ),
        compiler_params=pltpu.CompilerParams(
            dimension_semantics=("parallel",),
            vmem_limit_bytes=vmem_limit),
        cost_estimate=pl.CostEstimate(
            flops=flops, transcendentals=0, bytes_accessed=bytes_accessed),
    )(x_t, w1_t, b1_t, w2_t, b2_t, w3_k, b3_t)

    # Lane-dense (out, B_pad) result back to the PyTorch (B, out) layout.
    return out_t[:, :B].T.astype(out_dtype)


def init_params(key, input_size, output_size, hidden_sizes=(64, 64)):
    """Deterministic init mimicking PyTorch nn.Linear default (U[-1/sqrt(in), 1/sqrt(in)])."""
    sizes = [input_size] + list(hidden_sizes) + [output_size]
    names = ["1", "2", "3"]
    params = {}
    for n, (fan_in, fan_out) in zip(names, zip(sizes[:-1], sizes[1:])):
        key, kw, kb = jax.random.split(key, 3)
        bound = 1.0 / jnp.sqrt(float(fan_in))
        params[f"w{n}"] = jax.random.uniform(
            kw, (fan_in, fan_out), jnp.float32, -bound, bound)
        params[f"b{n}"] = jax.random.uniform(
            kb, (1, fan_out), jnp.float32, -bound, bound)
    return params


def reference_forward(x, params):
    h = jnp.maximum(x @ params["w1"] + params["b1"], 0.0)
    h = jnp.maximum(h @ params["w2"] + params["b2"], 0.0)
    return h @ params["w3"] + params["b3"]


if __name__ == "__main__":
    input_size = 32
    output_size = 1
    hidden_sizes = (64, 64)

    key = jax.random.PRNGKey(0)
    key, kx = jax.random.split(key)
    params = init_params(key, input_size, output_size, hidden_sizes)

    # Small batch, single grid step.
    x = jax.random.normal(kx, (8, input_size), jnp.float32)
    ref = reference_forward(x, params)

    # f32 compute path, strict tolerance.
    out_f32 = jax.block_until_ready(
        vf_baseline_forward(x, params, compute_dtype=jnp.float32))
    assert out_f32.shape == (8, output_size)
    assert jnp.allclose(out_f32, ref, atol=1e-5, rtol=1e-5)

    # Default path (bf16 matmul operands, f32 accumulation), loose tolerance.
    out_bf16 = jax.block_until_ready(vf_baseline_forward(x, params))
    assert out_bf16.shape == (8, output_size)
    assert jnp.allclose(out_bf16, ref, atol=5e-2, rtol=5e-2)

    # Multi-step grid + batch-padding path (tiny batch_tile forces >1 step).
    key, kx2 = jax.random.split(key)
    x_big = jax.random.normal(kx2, (300, input_size), jnp.float32)
    ref_big = reference_forward(x_big, params)
    out_big = jax.block_until_ready(
        vf_baseline_forward(x_big, params, batch_tile=128,
                            compute_dtype=jnp.float32))
    assert out_big.shape == (300, output_size)
    assert jnp.allclose(out_big, ref_big, atol=1e-5, rtol=1e-5)

    print("KERNEL_OK")
</pallas_src>

<mosaic_0001>
module attributes {stable_mosaic.version = 11 : i64} {
  func.func @_mlp_kernel(%arg0: i32, %arg1: memref<32x128xf32, #tpu.memory_space<vmem>>, %arg2: memref<64x32xf32, #tpu.memory_space<vmem>>, %arg3: memref<64x1xf32, #tpu.memory_space<vmem>>, %arg4: memref<64x64xf32, #tpu.memory_space<vmem>>, %arg5: memref<64x1xf32, #tpu.memory_space<vmem>>, %arg6: memref<64x1xf32, #tpu.memory_space<vmem>>, %arg7: memref<1x1xf32, #tpu.memory_space<vmem>>, %arg8: memref<1x128xf32, #tpu.memory_space<vmem>>) attributes {dimension_semantics = [#tpu.dimension_semantics<parallel>], iteration_bounds = array<i64: 1>, scalar_prefetch = 0 : i64, scratch_operands = 0 : i64, tpu.core_type = #tpu.core_type<tc>, window_params = [{transform_indices = @transform_0, window_bounds = array<i64: 32, 128>}, {pipeline_mode = #tpu.pipeline_mode<synchronous>, transform_indices = @transform_1, window_bounds = array<i64: 64, 32>}, {pipeline_mode = #tpu.pipeline_mode<synchronous>, transform_indices = @transform_2, window_bounds = array<i64: 64, 1>}, {pipeline_mode = #tpu.pipeline_mode<synchronous>, transform_indices = @transform_3, window_bounds = array<i64: 64, 64>}, {pipeline_mode = #tpu.pipeline_mode<synchronous>, transform_indices = @transform_4, window_bounds = array<i64: 64, 1>}, {pipeline_mode = #tpu.pipeline_mode<synchronous>, transform_indices = @transform_5, window_bounds = array<i64: 64, 1>}, {pipeline_mode = #tpu.pipeline_mode<synchronous>, transform_indices = @transform_6, window_bounds = array<i64: 1, 1>}, {transform_indices = @transform_7, window_bounds = array<i64: 1, 128>}]} {
    %c0 = arith.constant 0 : index
    %c0_0 = arith.constant 0 : index
    %0 = vector.load %arg1[%c0, %c0_0] : memref<32x128xf32, #tpu.memory_space<vmem>>, vector<32x128xf32>
    %c0_1 = arith.constant 0 : index
    %c0_2 = arith.constant 0 : index
    %1 = vector.load %arg2[%c0_1, %c0_2] : memref<64x32xf32, #tpu.memory_space<vmem>>, vector<64x32xf32>
    %cst = arith.constant dense<0.000000e+00> : vector<64x128xf32>
    %2 = tpu.matmul %1, %0, %cst {dimension_numbers = #tpu.dot_dimension_numbers<[1], [0], [0], [1], [0, 0, 1, 1], [], []>} : vector<64x32xf32>, vector<32x128xf32>, vector<64x128xf32> -> vector<64x128xf32>
    %c0_3 = arith.constant 0 : index
    %c0_4 = arith.constant 0 : index
    %3 = vector.load %arg3[%c0_3, %c0_4] : memref<64x1xf32, #tpu.memory_space<vmem>>, vector<64x1xf32>
    %4 = vector.broadcast %3 : vector<64x1xf32> to vector<64x128xf32>
    %5 = arith.addf %2, %4 : vector<64x128xf32>
    %cst_5 = arith.constant 0.000000e+00 : f32
    %6 = vector.broadcast %cst_5 : f32 to vector<64x128xf32>
    %7 = arith.maximumf %5, %6 : vector<64x128xf32>
    %c0_6 = arith.constant 0 : index
    %c0_7 = arith.constant 0 : index
    %8 = vector.load %arg4[%c0_6, %c0_7] : memref<64x64xf32, #tpu.memory_space<vmem>>, vector<64x64xf32>
    %cst_8 = arith.constant dense<0.000000e+00> : vector<64x128xf32>
    %9 = tpu.matmul %8, %7, %cst_8 {dimension_numbers = #tpu.dot_dimension_numbers<[1], [0], [0], [1], [0, 0, 1, 1], [], []>} : vector<64x64xf32>, vector<64x128xf32>, vector<64x128xf32> -> vector<64x128xf32>
    %c0_9 = arith.constant 0 : index
    %c0_10 = arith.constant 0 : index
    %10 = vector.load %arg5[%c0_9, %c0_10] : memref<64x1xf32, #tpu.memory_space<vmem>>, vector<64x1xf32>
    %11 = vector.broadcast %10 : vector<64x1xf32> to vector<64x128xf32>
    %12 = arith.addf %9, %11 : vector<64x128xf32>
    %cst_11 = arith.constant 0.000000e+00 : f32
    %13 = vector.broadcast %cst_11 : f32 to vector<64x128xf32>
    %14 = arith.maximumf %12, %13 : vector<64x128xf32>
    %c0_12 = arith.constant 0 : index
    %c0_13 = arith.constant 0 : index
    %15 = vector.load %arg6[%c0_12, %c0_13] : memref<64x1xf32, #tpu.memory_space<vmem>>, vector<64x1xf32>
    %16 = vector.broadcast %15 : vector<64x1xf32> to vector<64x128xf32>
    %17 = arith.mulf %14, %16 : vector<64x128xf32>
    %cst_14 = arith.constant dense<0.000000e+00> : vector<128xf32>
    %18 = vector.multi_reduction <add>, %17, %cst_14 [0] : vector<64x128xf32> to vector<128xf32>
    %19 = vector.shape_cast %18 : vector<128xf32> to vector<1x128xf32>
    %c0_15 = arith.constant 0 : index
    %c0_16 = arith.constant 0 : index
    %20 = vector.load %arg7[%c0_15, %c0_16] : memref<1x1xf32, #tpu.memory_space<vmem>>, vector<1x1xf32>
    %21 = vector.broadcast %20 : vector<1x1xf32> to vector<1x128xf32>
    %22 = arith.addf %19, %21 : vector<1x128xf32>
    %c0_17 = arith.constant 0 : index
    %c0_18 = arith.constant 0 : index
    %23 = vector.load %arg8[%c0_17, %c0_18] : memref<1x128xf32, #tpu.memory_space<vmem>>, vector<1x128xf32>
    tpu.vector_store %arg8[%c0_17, %c0_18], %22 {strides = array<i32>} : memref<1x128xf32, #tpu.memory_space<vmem>>, vector<1x128xf32>,
    return
  }
  func.func @transform_0(%arg0: i32) -> (i32, i32) {
    %c0_i32 = arith.constant 0 : i32
    %c0_i32_0 = arith.constant 0 : i32
    return %c0_i32, %arg0 : i32, i32
  }
  func.func @transform_1(%arg0: i32) -> (i32, i32) {
    %c0_i32 = arith.constant 0 : i32
    %c0_i32_0 = arith.constant 0 : i32
    %c0_i32_1 = arith.constant 0 : i32
    return %c0_i32, %c0_i32_0 : i32, i32
  }
  func.func @transform_2(%arg0: i32) -> (i32, i32) {
    %c0_i32 = arith.constant 0 : i32
    %c0_i32_0 = arith.constant 0 : i32
    %c0_i32_1 = arith.constant 0 : i32
    return %c0_i32, %c0_i32_0 : i32, i32
  }
  func.func @transform_3(%arg0: i32) -> (i32, i32) {
    %c0_i32 = arith.constant 0 : i32
    %c0_i32_0 = arith.constant 0 : i32
    %c0_i32_1 = arith.constant 0 : i32
    return %c0_i32, %c0_i32_0 : i32, i32
  }
  func.func @transform_4(%arg0: i32) -> (i32, i32) {
    %c0_i32 = arith.constant 0 : i32
    %c0_i32_0 = arith.constant 0 : i32
    %c0_i32_1 = arith.constant 0 : i32
    return %c0_i32, %c0_i32_0 : i32, i32
  }
  func.func @transform_5(%arg0: i32) -> (i32, i32) {
    %c0_i32 = arith.constant 0 : i32
    %c0_i32_0 = arith.constant 0 : i32
    %c0_i32_1 = arith.constant 0 : i32
    return %c0_i32, %c0_i32_0 : i32, i32
  }
  func.func @transform_6(%arg0: i32) -> (i32, i32) {
    %c0_i32 = arith.constant 0 : i32
    %c0_i32_0 = arith.constant 0 : i32
    %c0_i32_1 = arith.constant 0 : i32
    return %c0_i32, %c0_i32_0 : i32, i32
  }
  func.func @transform_7(%arg0: i32) -> (i32, i32) {
    %c0_i32 = arith.constant 0 : i32
    %c0_i32_0 = arith.constant 0 : i32
    return %c0_i32, %arg0 : i32, i32
  }
}

</mosaic_0001>

<llo_original>
// kernel: tpu_custom_call.1
$region0: #{tpu_custom_call.1}
  #allocation0 [shape = 'u32[]', space=smem, size = 0x4, offset = 0x4, fixed_abs, tag = 'smem constant byte address 0x4 - core index']
  #allocation1 [shape = 'u32[144,128]{1,0:T(1,128)}', space=vmem, size = 0x12000, scoped, tag = 'internal scratch']
  #allocation2 [shape = 'f32[1,1]{1,0:T(1,128)S(1)}', space=vmem, size = 0x200, scoped, tag = 'scoped memory for tpu_custom_call.1']
  %s0 = inlined_call_operand.vmem [shape: f32[32,128], index: 0, kind: input, shape index: {}]
  %s1 = inlined_call_operand.vmem [shape: f32[64,32], index: 1, kind: input, shape index: {}]
  %s2 = inlined_call_operand.vmem [shape: f32[64,1], index: 2, kind: input, shape index: {}]
  %s3 = inlined_call_operand.vmem [shape: f32[64,64], index: 3, kind: input, shape index: {}]
  %s4 = inlined_call_operand.vmem [shape: f32[64,1], index: 4, kind: input, shape index: {}]
  %s5 = inlined_call_operand.vmem [shape: f32[64,1], index: 5, kind: input, shape index: {}]
  %s6 = inlined_call_operand.<no memory space> [shape: f32[1,1], index: 6, kind: input, shape index: {}]
  %s7 = inlined_call_operand.hbm [shape: f32[1,128], index: 7, kind: output, shape index: {}]
  %s8 = sld [smem:[#allocation0]]
  $region38: #{tpu_custom_call.1} parent=0
    _
  %s10 = ssub.s32 1, %s8
  %s11 = scalar_select 0, %s10, %s8
  %v12 = vstv %s6
  %13 = vst [vmem:[#allocation2] sm:$0x1] %v12
  $region1: #{tpu_custom_call.1} parent=0
    #allocation3 [shape = 'u8[512]{0}', space=vmem, size = 0x400, scoped, tag = 'output window, operand 0, single buffered']
    #allocation4 [shape = 's32[1]{0}', space=sflag, size = 0x4, scoped, tag = 'scoped memory for tpu_custom_call.1']
    %14 = vsyncpa [#allocation4], 0
    // Predicated region
    $region2: #{tpu_custom_call.1} parent=1 // pred_check
      _
    $region3: #{tpu_custom_call.1} parent=1 // pred_check_branch
      %16 = sbr.rel (0) target = $region5
    $region4: #{tpu_custom_call.1} parent=1 // pred_region
      _
    $region5: #{tpu_custom_call.1} parent=1 // pred_fallthru
      _
    // Predicated region
    $region6: #{tpu_custom_call.1} parent=1 // pred_check
      _
    $region7: #{tpu_custom_call.1} parent=1 // pred_check_branch
      %18 = sbr.rel (0) target = $region9
    $region8: #{tpu_custom_call.1} parent=1 // pred_region
      _
    $region9: #{tpu_custom_call.1} parent=1 // pred_fallthru
      _
    // Predicated region
    $region10: #{tpu_custom_call.1} parent=1 // pred_check
      _
    $region11: #{tpu_custom_call.1} parent=1 // pred_check_branch
      %20 = sbr.rel (0) target = $region13
    $region12: #{tpu_custom_call.1} parent=1 // pred_region
      _
    $region13: #{tpu_custom_call.1} parent=1 // pred_fallthru
      _
    // Predicated region
    $region14: #{tpu_custom_call.1} parent=1 // pred_check
      _
    $region15: #{tpu_custom_call.1} parent=1 // pred_check_branch
      %22 = sbr.rel (0) target = $region17
    $region16: #{tpu_custom_call.1} parent=1 // pred_region
      _
    $region17: #{tpu_custom_call.1} parent=1 // pred_fallthru
      _
    // Predicated region
    $region18: #{tpu_custom_call.1} parent=1 // pred_check
      _
    $region19: #{tpu_custom_call.1} parent=1 // pred_check_branch
      %24 = sbr.rel (0) target = $region21
    $region20: #{tpu_custom_call.1} parent=1 // pred_region
      _
    $region21: #{tpu_custom_call.1} parent=1 // pred_fallthru
      _
    // Predicated region
    $region22: #{tpu_custom_call.1} parent=1 // pred_check
      _
    $region23: #{tpu_custom_call.1} parent=1 // pred_check_branch
      %26 = sbr.rel (0) target = $region25
    $region24: #{tpu_custom_call.1} parent=1 // pred_region
      _
    $region25: #{tpu_custom_call.1} parent=1 // pred_fallthru
      _
    // Predicated region
    $region26: #{tpu_custom_call.1} parent=1 // pred_check
      _
    $region27: #{tpu_custom_call.1} parent=1 // pred_check_branch
      %28 = sbr.rel (0) target = $region29
    $region28: #{tpu_custom_call.1} parent=1 // pred_region
      _
    $region29: #{tpu_custom_call.1} parent=1 // pred_fallthru
      _
    %v29 = vld [vmem:[%s0] sm:$0xff]
    %v30 = vld [vmem:[%s0 + $0x8] sm:$0xff]
    %v31 = vld [vmem:[%s0 + $0x10] sm:$0xff]
    %v32 = vld [vmem:[%s0 + $0x18] sm:$0xff]
    %v33 = vld [vmem:[%s1] sm:$0xff]
    %v34 = vld [vmem:[%s1 + $0x8] sm:$0xff]
    %v35 = vld [vmem:[%s1 + $0x10] sm:$0xff]
    %v36 = vld [vmem:[%s1 + $0x18] sm:$0xff]
    %v37 = vld [vmem:[%s1 + $0x20] sm:$0xff]
    %v38 = vld [vmem:[%s1 + $0x28] sm:$0xff]
    %v39 = vld [vmem:[%s1 + $0x30] sm:$0xff]
    %v40 = vld [vmem:[%s1 + $0x38] sm:$0xff]
    %v41 = vld [vmem:[%s2] sm:$0xff]
    %v42 = vld [vmem:[%s2 + $0x8] sm:$0xff]
    %v43 = vld [vmem:[%s2 + $0x10] sm:$0xff]
    %v44 = vld [vmem:[%s2 + $0x18] sm:$0xff]
    %v45 = vld [vmem:[%s2 + $0x20] sm:$0xff]
    %v46 = vld [vmem:[%s2 + $0x28] sm:$0xff]
    %v47 = vld [vmem:[%s2 + $0x30] sm:$0xff]
    %v48 = vld [vmem:[%s2 + $0x38] sm:$0xff]
    %50 = vset.pattern.permute.xlu0 0
    %51 = vperm.xlu0 %50, %v41
    %v52 = vpop.permute.xlu0 %51
    %55 = vset.pattern.permute.xlu0 0
    %56 = vperm.xlu0 %55, %v42
    %v57 = vpop.permute.xlu0 %56
    %60 = vset.pattern.permute.xlu0 0
    %61 = vperm.xlu0 %60, %v43
    %v62 = vpop.permute.xlu0 %61
    %65 = vset.pattern.permute.xlu0 0
    %66 = vperm.xlu0 %65, %v44
    %v67 = vpop.permute.xlu0 %66
    %70 = vset.pattern.permute.xlu0 0
    %71 = vperm.xlu0 %70, %v45
    %v72 = vpop.permute.xlu0 %71
    %75 = vset.pattern.permute.xlu0 0
    %76 = vperm.xlu0 %75, %v46
    %v77 = vpop.permute.xlu0 %76
    %80 = vset.pattern.permute.xlu0 0
    %81 = vperm.xlu0 %80, %v47
    %v82 = vpop.permute.xlu0 %81
    %85 = vset.pattern.permute.xlu0 0
    %86 = vperm.xlu0 %85, %v48
    %v87 = vpop.permute.xlu0 %86
    %vm89 = vcmask 261120
    %v91 = vsel %vm89, %v33, 0
    %v94 = vsel %vm89, %v34, 0
    %v97 = vsel %vm89, %v35, 0
    %v100 = vsel %vm89, %v36, 0
    %v103 = vsel %vm89, %v37, 0
    %v106 = vsel %vm89, %v38, 0
    %v109 = vsel %vm89, %v39, 0
    %v112 = vsel %vm89, %v40, 0
    %114 = vmatprep.subr.mxu0 0.0
    %115 = vmatpush1.msra.mxu0 0.0
    %116 = vmatprep.subr.mxu0 0.0
    %117 = vmatpush1.msra.mxu0 0.0
    %118 = vmatprep.subr.mxu0 0.0
    %119 = vmatpush1.msra.mxu0 0.0
    %120 = vmatprep.subr.mxu0 0.0
    %121 = vmatpush1.msra.mxu0 0.0
    %122 = vmatprep.subr.mxu0 0.0
    %123 = vmatpush1.msra.mxu0 0.0
    %124 = vmatprep.subr.mxu0 0.0
    %125 = vmatpush1.msra.mxu0 0.0
    %126 = vmatprep.subr.mxu0 0.0
    %127 = vmatpush1.msra.mxu0 0.0
    %128 = vmatprep.subr.mxu0 0.0
    %129 = vmatpush1.msra.mxu0 0.0
    %130 = vmatprep.subr.mxu0 0.0
    %131 = vmatpush1.msra.mxu0 0.0
    %132 = vmatprep.subr.mxu0 0.0
    %133 = vmatpush1.msra.mxu0 0.0
    %134 = vmatprep.subr.mxu0 0.0
    %135 = vmatpush1.msra.mxu0 0.0
    %136 = vmatprep.subr.mxu0 0.0
    %137 = vmatpush1.msra.mxu0 0.0
    %138 = vmatprep.subr.mxu0 0.0
    %139 = vmatpush1.msra.mxu0 %v32
    %140 = vmatprep.subr.mxu0 0.0
    %141 = vmatpush1.msra.mxu0 %v31
    %142 = vmatprep.subr.mxu0 0.0
    %143 = vmatpush1.msra.mxu0 %v30
    %144 = vmatprep.subr.mxu0 0.0
    %145 = vmatpush1.msra.mxu0 %v29
    %146 = vmatprep.subr.mxu0 0.0
    %147 = vmatpush2.msra.mxu0 0.0
    %148 = vmatprep.subr.mxu0 0.0
    %149 = vmatpush2.msra.mxu0 0.0
    %150 = vmatprep.subr.mxu0 0.0
    %151 = vmatpush2.msra.mxu0 0.0
    %152 = vmatprep.subr.mxu0 0.0
    %153 = vmatpush2.msra.mxu0 0.0
    %154 = vmatprep.subr.mxu0 0.0
    %155 = vmatpush2.msra.mxu0 0.0
    %156 = vmatprep.subr.mxu0 0.0
    %157 = vmatpush2.msra.mxu0 0.0
    %158 = vmatprep.subr.mxu0 0.0
    %159 = vmatpush2.msra.mxu0 0.0
    %160 = vmatprep.subr.mxu0 0.0
    %161 = vmatpush2.msra.mxu0 0.0
    %162 = vmatprep.subr.mxu0 0.0
    %163 = vmatpush2.msra.mxu0 0.0
    %164 = vmatprep.subr.mxu0 0.0
    %165 = vmatpush2.msra.mxu0 0.0
    %166 = vmatprep.subr.mxu0 0.0
    %167 = vmatpush2.msra.mxu0 0.0
    %168 = vmatprep.subr.mxu0 0.0
    %169 = vmatpush2.msra.mxu0 0.0
    %170 = vmatprep.subr.mxu0 0.0
    %171 = vmatpush2.msra.mxu0 0.0
    %172 = vmatprep.subr.mxu0 0.0
    %173 = vmatpush2.msra.mxu0 0.0
    %174 = vmatprep.subr.mxu0 0.0
    %175 = vmatpush2.msra.mxu0 0.0
    %176 = vmatprep.subr.mxu0 0.0
    %177 = vmatpush2.msra.mxu0 0.0
    %178 = vmatprep.mubr.f32.mxu0 0.0
    %179 = vmatmul.mubr.f32.gmra.mxu0 %v91
    %v180 = vpop.f32.mrf.mxu0
    %v181 = vadd.f32 %v52, %v180
    %v182 = vpop.f32.mrf.mxu0
    %183 = vmatprep.mubr.f32.mxu0 0.0
    %184 = vmatmul.mubr.f32.gmra.mxu0 %v94
    %v185 = vpop.f32.mrf.mxu0
    %v186 = vadd.f32 %v57, %v185
    %v187 = vpop.f32.mrf.mxu0
    %188 = vmatprep.mubr.f32.mxu0 0.0
    %189 = vmatmul.mubr.f32.gmra.mxu0 %v97
    %v190 = vpop.f32.mrf.mxu0
    %v191 = vadd.f32 %v62, %v190
    %v192 = vpop.f32.mrf.mxu0
    %193 = vmatprep.mubr.f32.mxu0 0.0
    %194 = vmatmul.mubr.f32.gmra.mxu0 %v100
    %v195 = vpop.f32.mrf.mxu0
    %v196 = vadd.f32 %v67, %v195
    %v197 = vpop.f32.mrf.mxu0
    %198 = vmatprep.mubr.f32.mxu0 0.0
    %199 = vmatmul.mubr.f32.gmra.mxu0 %v103
    %v200 = vpop.f32.mrf.mxu0
    %v201 = vadd.f32 %v72, %v200
    %v202 = vpop.f32.mrf.mxu0
    %203 = vmatprep.mubr.f32.mxu0 0.0
    %204 = vmatmul.mubr.f32.gmra.mxu0 %v106
    %v205 = vpop.f32.mrf.mxu0
    %v206 = vadd.f32 %v77, %v205
    %v207 = vpop.f32.mrf.mxu0
    %208 = vmatprep.mubr.f32.mxu0 0.0
    %209 = vmatmul.mubr.f32.gmra.mxu0 %v109
    %v210 = vpop.f32.mrf.mxu0
    %v211 = vadd.f32 %v82, %v210
    %v212 = vpop.f32.mrf.mxu0
    %213 = vmatprep.mubr.f32.mxu0 0.0
    %214 = vmatmul.mubr.f32.gmra.mxu0 %v112
    %v215 = vpop.f32.mrf.mxu0
    %v216 = vadd.f32 %v87, %v215
    %v217 = vpop.f32.mrf.mxu0
    %218 = vdwg.mxu0
    %v219 = vmax.f32 %v181, 0.0
    %v220 = vmax.f32 %v186, 0.0
    %v221 = vmax.f32 %v191, 0.0
    %v222 = vmax.f32 %v196, 0.0
    %v223 = vmax.f32 %v201, 0.0
    %v224 = vmax.f32 %v206, 0.0
    %v225 = vmax.f32 %v211, 0.0
    %v226 = vmax.f32 %v216, 0.0
    %v227 = vld [vmem:[%s3] sm:$0xff]
    %v228 = vld [vmem:[%s3 + $0x8] sm:$0xff]
    %v229 = vld [vmem:[%s3 + $0x10] sm:$0xff]
    %v230 = vld [vmem:[%s3 + $0x18] sm:$0xff]
    %v231 = vld [vmem:[%s3 + $0x20] sm:$0xff]
    %v232 = vld [vmem:[%s3 + $0x28] sm:$0xff]
    %v233 = vld [vmem:[%s3 + $0x30] sm:$0xff]
    %v234 = vld [vmem:[%s3 + $0x38] sm:$0xff]
    %v235 = vld [vmem:[%s4] sm:$0xff]
    %v236 = vld [vmem:[%s4 + $0x8] sm:$0xff]
    %v237 = vld [vmem:[%s4 + $0x10] sm:$0xff]
    %v238 = vld [vmem:[%s4 + $0x18] sm:$0xff]
    %v239 = vld [vmem:[%s4 + $0x20] sm:$0xff]
    %v240 = vld [vmem:[%s4 + $0x28] sm:$0xff]
    %v241 = vld [vmem:[%s4 + $0x30] sm:$0xff]
    %v242 = vld [vmem:[%s4 + $0x38] sm:$0xff]
    %244 = vset.pattern.permute.xlu0 0
    %245 = vperm.xlu0 %244, %v235
    %v246 = vpop.permute.xlu0 %245
    %249 = vset.pattern.permute.xlu0 0
    %250 = vperm.xlu0 %249, %v236
    %v251 = vpop.permute.xlu0 %250
    %254 = vset.pattern.permute.xlu0 0
    %255 = vperm.xlu0 %254, %v237
    %v256 = vpop.permute.xlu0 %255
    %259 = vset.pattern.permute.xlu0 0
    %260 = vperm.xlu0 %259, %v238
    %v261 = vpop.permute.xlu0 %260
    %264 = vset.pattern.permute.xlu0 0
    %265 = vperm.xlu0 %264, %v239
    %v266 = vpop.permute.xlu0 %265
    %269 = vset.pattern.permute.xlu0 0
    %270 = vperm.xlu0 %269, %v240
    %v271 = vpop.permute.xlu0 %270
    %274 = vset.pattern.permute.xlu0 0
    %275 = vperm.xlu0 %274, %v241
    %v276 = vpop.permute.xlu0 %275
    %279 = vset.pattern.permute.xlu0 0
    %280 = vperm.xlu0 %279, %v242
    %v281 = vpop.permute.xlu0 %280
    %vm283 = vcmask 523264
    %v285 = vsel %vm283, %v227, 0
    %v288 = vsel %vm283, %v228, 0
    %v291 = vsel %vm283, %v229, 0
    %v294 = vsel %vm283, %v230, 0
    %v297 = vsel %vm283, %v231, 0
    %v300 = vsel %vm283, %v232, 0
    %v303 = vsel %vm283, %v233, 0
    %v306 = vsel %vm283, %v234, 0
    %308 = vmatprep.subr.mxu0 0.0
    %309 = vmatpush1.msra.mxu0 0.0
    %310 = vmatprep.subr.mxu0 0.0
    %311 = vmatpush1.msra.mxu0 0.0
    %312 = vmatprep.subr.mxu0 0.0
    %313 = vmatpush1.msra.mxu0 0.0
    %314 = vmatprep.subr.mxu0 0.0
    %315 = vmatpush1.msra.mxu0 0.0
    %316 = vmatprep.subr.mxu0 0.0
    %317 = vmatpush1.msra.mxu0 0.0
    %318 = vmatprep.subr.mxu0 0.0
    %319 = vmatpush1.msra.mxu0 0.0
    %320 = vmatprep.subr.mxu0 0.0
    %321 = vmatpush1.msra.mxu0 0.0
    %322 = vmatprep.subr.mxu0 0.0
    %323 = vmatpush1.msra.mxu0 0.0
    %324 = vmatprep.subr.mxu0 0.0
    %325 = vmatpush1.msra.mxu0 %v226
    %326 = vmatprep.subr.mxu0 0.0
    %327 = vmatpush1.msra.mxu0 %v225
    %328 = vmatprep.subr.mxu0 0.0
    %329 = vmatpush1.msra.mxu0 %v224
    %330 = vmatprep.subr.mxu0 0.0
    %331 = vmatpush1.msra.mxu0 %v223
    %332 = vmatprep.subr.mxu0 0.0
    %333 = vmatpush1.msra.mxu0 %v222
    %334 = vmatprep.subr.mxu0 0.0
    %335 = vmatpush1.msra.mxu0 %v221
    %336 = vmatprep.subr.mxu0 0.0
    %337 = vmatpush1.msra.mxu0 %v220
    %338 = vmatprep.subr.mxu0 0.0
    %339 = vmatpush1.msra.mxu0 %v219
    %340 = vmatprep.subr.mxu0 0.0
    %341 = vmatpush2.msra.mxu0 0.0
    %342 = vmatprep.subr.mxu0 0.0
    %343 = vmatpush2.msra.mxu0 0.0
    %344 = vmatprep.subr.mxu0 0.0
    %345 = vmatpush2.msra.mxu0 0.0
    %346 = vmatprep.subr.mxu0 0.0
    %347 = vmatpush2.msra.mxu0 0.0
    %348 = vmatprep.subr.mxu0 0.0
    %349 = vmatpush2.msra.mxu0 0.0
    %350 = vmatprep.subr.mxu0 0.0
    %351 = vmatpush2.msra.mxu0 0.0
    %352 = vmatprep.subr.mxu0 0.0
    %353 = vmatpush2.msra.mxu0 0.0
    %354 = vmatprep.subr.mxu0 0.0
    %355 = vmatpush2.msra.mxu0 0.0
    %356 = vmatprep.subr.mxu0 0.0
    %357 = vmatpush2.msra.mxu0 0.0
    %358 = vmatprep.subr.mxu0 0.0
    %359 = vmatpush2.msra.mxu0 0.0
    %360 = vmatprep.subr.mxu0 0.0
    %361 = vmatpush2.msra.mxu0 0.0
    %362 = vmatprep.subr.mxu0 0.0
    %363 = vmatpush2.msra.mxu0 0.0
    %364 = vmatprep.subr.mxu0 0.0
    %365 = vmatpush2.msra.mxu0 0.0
    %366 = vmatprep.subr.mxu0 0.0
    %367 = vmatpush2.msra.mxu0 0.0
    %368 = vmatprep.subr.mxu0 0.0
    %369 = vmatpush2.msra.mxu0 0.0
    %370 = vmatprep.subr.mxu0 0.0
    %371 = vmatpush2.msra.mxu0 0.0
    %372 = vmatprep.mubr.f32.mxu0 0.0
    %373 = vmatmul.mubr.f32.gmra.mxu0 %v285
    %v374 = vpop.f32.mrf.mxu0
    %v375 = vadd.f32 %v246, %v374
    %v376 = vpop.f32.mrf.mxu0
    %377 = vmatprep.mubr.f32.mxu0 0.0
    %378 = vmatmul.mubr.f32.gmra.mxu0 %v288
    %v379 = vpop.f32.mrf.mxu0
    %v380 = vadd.f32 %v251, %v379
    %v381 = vpop.f32.mrf.mxu0
    %382 = vmatprep.mubr.f32.mxu0 0.0
    %383 = vmatmul.mubr.f32.gmra.mxu0 %v291
    %v384 = vpop.f32.mrf.mxu0
    %v385 = vadd.f32 %v256, %v384
    %v386 = vpop.f32.mrf.mxu0
    %387 = vmatprep.mubr.f32.mxu0 0.0
    %388 = vmatmul.mubr.f32.gmra.mxu0 %v294
    %v389 = vpop.f32.mrf.mxu0
    %v390 = vadd.f32 %v261, %v389
    %v391 = vpop.f32.mrf.mxu0
    %392 = vmatprep.mubr.f32.mxu0 0.0
    %393 = vmatmul.mubr.f32.gmra.mxu0 %v297
    %v394 = vpop.f32.mrf.mxu0
    %v395 = vadd.f32 %v266, %v394
    %v396 = vpop.f32.mrf.mxu0
    %397 = vmatprep.mubr.f32.mxu0 0.0
    %398 = vmatmul.mubr.f32.gmra.mxu0 %v300
    %v399 = vpop.f32.mrf.mxu0
    %v400 = vadd.f32 %v271, %v399
    %v401 = vpop.f32.mrf.mxu0
    %402 = vmatprep.mubr.f32.mxu0 0.0
    %403 = vmatmul.mubr.f32.gmra.mxu0 %v303
    %v404 = vpop.f32.mrf.mxu0
    %v405 = vadd.f32 %v276, %v404
    %v406 = vpop.f32.mrf.mxu0
    %407 = vmatprep.mubr.f32.mxu0 0.0
    %408 = vmatmul.mubr.f32.gmra.mxu0 %v306
    %v409 = vpop.f32.mrf.mxu0
    %v410 = vadd.f32 %v281, %v409
    %v411 = vpop.f32.mrf.mxu0
    %412 = vdwg.mxu0
    %v413 = vmax.f32 %v375, 0.0
    %v414 = vmax.f32 %v380, 0.0
    %v415 = vmax.f32 %v385, 0.0
    %v416 = vmax.f32 %v390, 0.0
    %v417 = vmax.f32 %v395, 0.0
    %v418 = vmax.f32 %v400, 0.0
    %v419 = vmax.f32 %v405, 0.0
    %v420 = vmax.f32 %v410, 0.0
    %v421 = vld [vmem:[%s5] sm:$0xff]
    %v422 = vld [vmem:[%s5 + $0x8] sm:$0xff]
    %v423 = vld [vmem:[%s5 + $0x10] sm:$0xff]
    %v424 = vld [vmem:[%s5 + $0x18] sm:$0xff]
    %v425 = vld [vmem:[%s5 + $0x20] sm:$0xff]
    %v426 = vld [vmem:[%s5 + $0x28] sm:$0xff]
    %v427 = vld [vmem:[%s5 + $0x30] sm:$0xff]
    %v428 = vld [vmem:[%s5 + $0x38] sm:$0xff]
    %430 = vset.pattern.permute.xlu0 0
    %431 = vperm.xlu0 %430, %v421
    %v432 = vpop.permute.xlu0 %431
    %435 = vset.pattern.permute.xlu0 0
    %436 = vperm.xlu0 %435, %v422
    %v437 = vpop.permute.xlu0 %436
    %440 = vset.pattern.permute.xlu0 0
    %441 = vperm.xlu0 %440, %v423
    %v442 = vpop.permute.xlu0 %441
    %445 = vset.pattern.permute.xlu0 0
    %446 = vperm.xlu0 %445, %v424
    %v447 = vpop.permute.xlu0 %446
    %450 = vset.pattern.permute.xlu0 0
    %451 = vperm.xlu0 %450, %v425
    %v452 = vpop.permute.xlu0 %451
    %455 = vset.pattern.permute.xlu0 0
    %456 = vperm.xlu0 %455, %v426
    %v457 = vpop.permute.xlu0 %456
    %460 = vset.pattern.permute.xlu0 0
    %461 = vperm.xlu0 %460, %v427
    %v462 = vpop.permute.xlu0 %461
    %465 = vset.pattern.permute.xlu0 0
    %466 = vperm.xlu0 %465, %v428
    %v467 = vpop.permute.xlu0 %466
    %v469 = vmul.f32 %v413, %v432
    %v470 = vmul.f32 %v414, %v437
    %v471 = vmul.f32 %v415, %v442
    %v472 = vmul.f32 %v416, %v447
    %v473 = vmul.f32 %v417, %v452
    %v474 = vmul.f32 %v418, %v457
    %v475 = vmul.f32 %v419, %v462
    %v476 = vmul.f32 %v420, %v467
    %v477 = vadd.f32 %v469, %v470
    %v478 = vadd.f32 %v477, %v471
    %v479 = vadd.f32 %v478, %v472
    %v480 = vadd.f32 %v479, %v473
    %v481 = vadd.f32 %v480, %v474
    %v482 = vadd.f32 %v481, %v475
    %v483 = vadd.f32 %v482, %v476
    %v484 = vrot.slane %v483, 4
    %v485 = vadd.f32 %v483, %v484
    %v486 = vrot.slane %v485, 2
    %v487 = vadd.f32 %v485, %v486
    %v488 = vrot.slane %v487, 1
    %v489 = vadd.f32 %v487, %v488
    %v490 = vld [vmem:[#allocation2] sm:$0x1]
    %492 = vset.pattern.permute.xlu0 0
    %493 = vperm.xlu0 %492, %v490
    %v494 = vpop.permute.xlu0 %493
    %v496 = vlaneseq
    %v497 = vshrl.u32 %v496, 7
    %v498 = vsub.s32 0, %v497
    %v499 = vrot.slane %v494, %v498
    %v500 = vadd.f32 %v489, %v499
    %501 = vst [vmem:[#allocation3] sm:$0x1] %v500
    // Predicated region
    $region30: #{tpu_custom_call.1} parent=1 // pred_check
      _
    $region31: #{tpu_custom_call.1} parent=1 // pred_check_branch
      %503 = sbr.rel (0) target = $region33
    $region32: #{tpu_custom_call.1} parent=1 // pred_region
      %s505 = ssub.s32 16, 16
      %506 = vsyncadd [#allocation4], %s505
      %s508 = sshll.u32 [#allocation3], 4
      %s509 = int_to_ptr.vmem [resolvable:$true] %s508
      %511 = dma.vmem_to_hbm [thread:$0]  %s509, 16, %s7, [#allocation4]
    $region33: #{tpu_custom_call.1} parent=1 // pred_fallthru
      _
    // Predicated region
    $region34: #{tpu_custom_call.1} parent=1 // pred_check
      _
    $region35: #{tpu_custom_call.1} parent=1 // pred_check_branch
      %513 = sbr.rel (0) target = $region37
    $region36: #{tpu_custom_call.1} parent=1 // pred_region
      %514 = dma.done [#allocation4], 16
    $region37: #{tpu_custom_call.1} parent=1 // pred_fallthru
      _
    %515 = vsyncpa [#allocation4], 1

</llo_original>
